<compile_context>
chip_gen: v6e
topology: v6e:2x2x1
jax: 0.10.0
libtpu: 0.0.40
codegen_flags: <defaults>
</compile_context>

<pallas_src>
import jax
import jax.numpy as jnp
from jax.experimental import pallas as pl
from jax.experimental.pallas import tpu as pltpu

HIDDEN = 100
SEQ_LEN = 6          # fc1 expects hidden_size * 6 inputs -> each example is 6 token ids
LANE = 128
SUBLANE = 8
NEG_BIG = -1e30      # bias for padded logit columns (exp underflows to 0, no NaN)


def _round_up(x, m):
    return ((x + m - 1) // m) * m


# -----------------------------------------------------------------------------
# Kernel: fused (embedding + fc1) via 6 per-position one-hot matmuls, then fc2, fc3, softmax.
# -----------------------------------------------------------------------------
def _fused_mlp_kernel(ids_ref, t_ref, b1_ref, w2_ref, b2_ref, w3_ref, b3_ref, o_ref):
    ids = ids_ref[...]                       # (TB, 6) int32
    tb = ids.shape[0]
    v_pad = t_ref.shape[1]                   # vocab rounded up to a lane multiple
    h_pad = t_ref.shape[2]

    # One lane-iota, reused for all positions.
    iota = jax.lax.broadcasted_iota(jnp.int32, (tb, v_pad), 1)

    # (embedding + fc1) folded: sum_s one_hot_s @ T[s] ; one compare + direct bf16 cast per
    # position (no f32 zeros/adds/converts on the VALU path), f32 accumulate on the MXU path.
    h = jnp.zeros((tb, h_pad), jnp.float32)
    for s in range(SEQ_LEN):
        one_hot = (iota == ids[:, s:s + 1]).astype(jnp.bfloat16)    # (TB, v_pad)
        h = h + jnp.dot(one_hot, t_ref[s], preferred_element_type=jnp.float32)
    h = jnp.maximum(h + b1_ref[...], 0.0)

    # fc2 + ReLU
    h = jnp.dot(h.astype(jnp.bfloat16), w2_ref[...],
                preferred_element_type=jnp.float32) + b2_ref[...]
    h = jnp.maximum(h, 0.0)

    # fc3 (padded logit columns carry a -1e30 bias)
    logits = jnp.dot(h.astype(jnp.bfloat16), w3_ref[...],
                     preferred_element_type=jnp.float32) + b3_ref[...]

    # Numerically stable softmax in f32; padded columns contribute exp(-1e30)=0.
    m = jnp.max(logits, axis=-1, keepdims=True)
    e = jnp.exp(logits - m)
    denom = jnp.sum(e, axis=-1, keepdims=True)
    o_ref[...] = (e * pl.reciprocal(denom, approx=True)).astype(o_ref.dtype)


# -----------------------------------------------------------------------------
# Parameter preparation (one-time, pure JAX): fold fc1 into a per-position table,
# pad to lane multiples, cast matmul operands to bf16.
# -----------------------------------------------------------------------------
def prepare_params(params, word_vocab_size, output_size):
    emb, w1, b1, w2, b2, w3, b3 = params            # Linear weights are [in, out]
    H = HIDDEN
    V = word_vocab_size

    # T[s, v, :] = emb[v, :] @ W1[s*H:(s+1)*H, :]
    w1_r = w1.astype(jnp.float32).reshape(SEQ_LEN, H, H)
    t = jnp.einsum("vh,sho->svo", emb.astype(jnp.float32), w1_r)     # (6, V, H)

    v_pad = _round_up(V, LANE)
    h_pad = _round_up(H, LANE)
    out_pad = _round_up(output_size, LANE)

    t_pad = jnp.zeros((SEQ_LEN, v_pad, h_pad), jnp.float32).at[:, :V, :H].set(t)
    t_pad = t_pad.astype(jnp.bfloat16)

    b1_pad = jnp.zeros((1, h_pad), jnp.float32).at[:, :H].set(b1.reshape(1, H))

    w2_pad = jnp.zeros((h_pad, h_pad), jnp.float32).at[:H, :H].set(w2)
    w2_pad = w2_pad.astype(jnp.bfloat16)
    b2_pad = jnp.zeros((1, h_pad), jnp.float32).at[:, :H].set(b2.reshape(1, H))

    w3_pad = jnp.zeros((h_pad, out_pad), jnp.float32).at[:H, :output_size].set(w3)
    w3_pad = w3_pad.astype(jnp.bfloat16)
    b3_pad = jnp.full((1, out_pad), NEG_BIG, jnp.float32).at[:, :output_size].set(
        b3.reshape(1, output_size))

    return (t_pad, b1_pad, w2_pad, b2_pad, w3_pad, b3_pad)


# -----------------------------------------------------------------------------
# Forward wrapper
# -----------------------------------------------------------------------------
def base_model_forward(token_ids, packed, *, output_size, tile_b=None):
    """token_ids: int [B, 6]; returns softmax probabilities [B, output_size] (f32)."""
    t_pad, b1_p, w2_p, b2_p, w3_p, b3_p = packed
    B = token_ids.shape[0]
    seq, v_pad, h_pad = t_pad.shape
    out_pad = w3_p.shape[1]

    ids = token_ids.astype(jnp.int32)

    # Large batch tile (multiple of 8) to amortize per-step overhead, but capped so the grid
    # has >=2 steps whenever B allows it (v7x: 2 TensorCores share the "parallel" grid axis).
    if tile_b is None:
        tile_b = 1024
    two_step_cap = max(SUBLANE, _round_up(-(-B // 2), SUBLANE))
    tile_b = int(_round_up(min(int(tile_b), two_step_cap), SUBLANE))
    b_pad = int(_round_up(B, tile_b))
    if b_pad != B:
        ids = jnp.pad(ids, ((0, b_pad - B), (0, 0)))                 # id 0 -> valid pad rows

    grid = (b_pad // tile_b,)

    out = pl.pallas_call(
        _fused_mlp_kernel,
        out_shape=jax.ShapeDtypeStruct((b_pad, out_pad), jnp.float32),
        grid=grid,
        in_specs=[
            pl.BlockSpec((tile_b, SEQ_LEN), lambda i: (i, 0)),        # token ids (tiny)
            pl.BlockSpec((seq, v_pad, h_pad), lambda i: (0, 0, 0)),   # folded emb@W1 table
            pl.BlockSpec((1, h_pad), lambda i: (0, 0)),               # b1
            pl.BlockSpec((h_pad, h_pad), lambda i: (0, 0)),           # w2
            pl.BlockSpec((1, h_pad), lambda i: (0, 0)),               # b2
            pl.BlockSpec((h_pad, out_pad), lambda i: (0, 0)),         # w3
            pl.BlockSpec((1, out_pad), lambda i: (0, 0)),             # b3
        ],
        out_specs=pl.BlockSpec((tile_b, out_pad), lambda i: (i, 0)),
        compiler_params=pltpu.CompilerParams(
            dimension_semantics=("parallel",),
            vmem_limit_bytes=32 << 20),    # headroom (v5e scoped default is 16 MiB)
    )(ids, t_pad, b1_p, w2_p, b2_p, w3_p, b3_p)

    # TODO(synk): if a downstream consumer can take the padded [B, out_pad] block (or bf16),
    # drop this slice to remove the extra HBM read+write pass.
    return out[:B, :output_size]


# -----------------------------------------------------------------------------
# Original-parameterization init (matches BaseModel shapes; weights pre-transposed [in, out])
# and a pure-JAX f32 reference for correctness checking.
# -----------------------------------------------------------------------------
def init_params(key, word_vocab_size, output_size):
    k = jax.random.split(key, 7)
    scale = 0.05
    emb = scale * jax.random.normal(k[0], (word_vocab_size, HIDDEN), jnp.float32)
    w1 = scale * jax.random.normal(k[1], (HIDDEN * SEQ_LEN, HIDDEN), jnp.float32)
    b1 = scale * jax.random.normal(k[2], (1, HIDDEN), jnp.float32)
    w2 = scale * jax.random.normal(k[3], (HIDDEN, HIDDEN), jnp.float32)
    b2 = scale * jax.random.normal(k[4], (1, HIDDEN), jnp.float32)
    w3 = scale * jax.random.normal(k[5], (HIDDEN, output_size), jnp.float32)
    b3 = scale * jax.random.normal(k[6], (1, output_size), jnp.float32)
    return (emb, w1, b1, w2, b2, w3, b3)


def reference_forward(token_ids, params):
    emb, w1, b1, w2, b2, w3, b3 = params
    x = jnp.take(emb, token_ids, axis=0).reshape(token_ids.shape[0], -1)
    h = jnp.maximum(x @ w1 + b1, 0.0)
    h = jnp.maximum(h @ w2 + b2, 0.0)
    logits = h @ w3 + b3
    return jax.nn.softmax(logits, axis=-1)


if __name__ == "__main__":
    key = jax.random.PRNGKey(0)
    word_vocab_size = 50
    output_size = 5
    batch = 8

    pkey, xkey = jax.random.split(key)
    params = init_params(pkey, word_vocab_size, output_size)
    packed = prepare_params(params, word_vocab_size, output_size)
    token_ids = jax.random.randint(xkey, (batch, SEQ_LEN), 0, word_vocab_size, jnp.int32)

    probs = base_model_forward(token_ids, packed, output_size=output_size)
    probs = jax.block_until_ready(probs)

    ref = reference_forward(token_ids, params)

    assert probs.shape == (batch, output_size)
    # softmax rows sum to ~1 (approx reciprocal + bf16 matmuls -> relaxed tolerance)
    assert bool(jnp.allclose(jnp.sum(probs, axis=-1), 1.0, atol=5e-3))
    # matches the f32 reference of the original module
    assert bool(jnp.allclose(probs, ref, atol=2e-2))

    print("KERNEL_OK")
</pallas_src>

<mosaic_0001>
module attributes {stable_mosaic.version = 11 : i64} {
  func.func @_fused_mlp_kernel(%arg0: i32, %arg1: memref<8x6xi32, #tpu.memory_space<vmem>>, %arg2: memref<6x128x128xbf16, #tpu.memory_space<vmem>>, %arg3: memref<1x128xf32, #tpu.memory_space<vmem>>, %arg4: memref<128x128xbf16, #tpu.memory_space<vmem>>, %arg5: memref<1x128xf32, #tpu.memory_space<vmem>>, %arg6: memref<128x128xbf16, #tpu.memory_space<vmem>>, %arg7: memref<1x128xf32, #tpu.memory_space<vmem>>, %arg8: memref<8x128xf32, #tpu.memory_space<vmem>>) attributes {dimension_semantics = [#tpu.dimension_semantics<parallel>], iteration_bounds = array<i64: 1>, scalar_prefetch = 0 : i64, scratch_operands = 0 : i64, tpu.core_type = #tpu.core_type<tc>, window_params = [{transform_indices = @transform_0, window_bounds = array<i64: 8, 6>}, {pipeline_mode = #tpu.pipeline_mode<synchronous>, transform_indices = @transform_1, window_bounds = array<i64: 6, 128, 128>}, {pipeline_mode = #tpu.pipeline_mode<synchronous>, transform_indices = @transform_2, window_bounds = array<i64: 1, 128>}, {pipeline_mode = #tpu.pipeline_mode<synchronous>, transform_indices = @transform_3, window_bounds = array<i64: 128, 128>}, {pipeline_mode = #tpu.pipeline_mode<synchronous>, transform_indices = @transform_4, window_bounds = array<i64: 1, 128>}, {pipeline_mode = #tpu.pipeline_mode<synchronous>, transform_indices = @transform_5, window_bounds = array<i64: 128, 128>}, {pipeline_mode = #tpu.pipeline_mode<synchronous>, transform_indices = @transform_6, window_bounds = array<i64: 1, 128>}, {transform_indices = @transform_7, window_bounds = array<i64: 8, 128>}]} {
    %c0 = arith.constant 0 : index
    %c0_0 = arith.constant 0 : index
    %0 = vector.load %arg1[%c0, %c0_0] : memref<8x6xi32, #tpu.memory_space<vmem>>, vector<8x6xi32>
    %1 = tpu.iota {dimensions = array<i32: 1>} : vector<8x128xi32>
    %cst = arith.constant 0.000000e+00 : f32
    %2 = vector.broadcast %cst : f32 to vector<8x128xf32>
    %3 = vector.extract_strided_slice %0 {offsets = [0, 0], sizes = [8, 1], strides = [1, 1]} : vector<8x6xi32> to vector<8x1xi32>
    %4 = vector.broadcast %3 : vector<8x1xi32> to vector<8x128xi32>
    %5 = arith.cmpi eq, %1, %4 : vector<8x128xi32>
    %6 = arith.extui %5 : vector<8x128xi1> to vector<8x128xi32>
    %7 = arith.sitofp %6 : vector<8x128xi32> to vector<8x128xf32>
    %8 = arith.truncf %7 : vector<8x128xf32> to vector<8x128xbf16>
    %c0_1 = arith.constant 0 : index
    %c0_2 = arith.constant 0 : index
    %c0_3 = arith.constant 0 : index
    %9 = vector.load %arg2[%c0_1, %c0_2, %c0_3] : memref<6x128x128xbf16, #tpu.memory_space<vmem>>, vector<1x128x128xbf16>
    %10 = vector.shape_cast %9 : vector<1x128x128xbf16> to vector<128x128xbf16>
    %cst_4 = arith.constant dense<0.000000e+00> : vector<8x128xf32>
    %11 = tpu.matmul %8, %10, %cst_4 {dimension_numbers = #tpu.dot_dimension_numbers<[1], [0], [0], [1], [0, 0, 1, 1], [], []>} : vector<8x128xbf16>, vector<128x128xbf16>, vector<8x128xf32> -> vector<8x128xf32>
    %12 = arith.addf %2, %11 : vector<8x128xf32>
    %13 = vector.extract_strided_slice %0 {offsets = [0, 1], sizes = [8, 1], strides = [1, 1]} : vector<8x6xi32> to vector<8x1xi32>
    %14 = vector.broadcast %13 : vector<8x1xi32> to vector<8x128xi32>
    %15 = arith.cmpi eq, %1, %14 : vector<8x128xi32>
    %16 = arith.extui %15 : vector<8x128xi1> to vector<8x128xi32>
    %17 = arith.sitofp %16 : vector<8x128xi32> to vector<8x128xf32>
    %18 = arith.truncf %17 : vector<8x128xf32> to vector<8x128xbf16>
    %c1 = arith.constant 1 : index
    %c0_5 = arith.constant 0 : index
    %c0_6 = arith.constant 0 : index
    %19 = vector.load %arg2[%c1, %c0_5, %c0_6] : memref<6x128x128xbf16, #tpu.memory_space<vmem>>, vector<1x128x128xbf16>
    %20 = vector.shape_cast %19 : vector<1x128x128xbf16> to vector<128x128xbf16>
    %cst_7 = arith.constant dense<0.000000e+00> : vector<8x128xf32>
    %21 = tpu.matmul %18, %20, %cst_7 {dimension_numbers = #tpu.dot_dimension_numbers<[1], [0], [0], [1], [0, 0, 1, 1], [], []>} : vector<8x128xbf16>, vector<128x128xbf16>, vector<8x128xf32> -> vector<8x128xf32>
    %22 = arith.addf %12, %21 : vector<8x128xf32>
    %23 = vector.extract_strided_slice %0 {offsets = [0, 2], sizes = [8, 1], strides = [1, 1]} : vector<8x6xi32> to vector<8x1xi32>
    %24 = vector.broadcast %23 : vector<8x1xi32> to vector<8x128xi32>
    %25 = arith.cmpi eq, %1, %24 : vector<8x128xi32>
    %26 = arith.extui %25 : vector<8x128xi1> to vector<8x128xi32>
    %27 = arith.sitofp %26 : vector<8x128xi32> to vector<8x128xf32>
    %28 = arith.truncf %27 : vector<8x128xf32> to vector<8x128xbf16>
    %c2 = arith.constant 2 : index
    %c0_8 = arith.constant 0 : index
    %c0_9 = arith.constant 0 : index
    %29 = vector.load %arg2[%c2, %c0_8, %c0_9] : memref<6x128x128xbf16, #tpu.memory_space<vmem>>, vector<1x128x128xbf16>
    %30 = vector.shape_cast %29 : vector<1x128x128xbf16> to vector<128x128xbf16>
    %cst_10 = arith.constant dense<0.000000e+00> : vector<8x128xf32>
    %31 = tpu.matmul %28, %30, %cst_10 {dimension_numbers = #tpu.dot_dimension_numbers<[1], [0], [0], [1], [0, 0, 1, 1], [], []>} : vector<8x128xbf16>, vector<128x128xbf16>, vector<8x128xf32> -> vector<8x128xf32>
    %32 = arith.addf %22, %31 : vector<8x128xf32>
    %33 = vector.extract_strided_slice %0 {offsets = [0, 3], sizes = [8, 1], strides = [1, 1]} : vector<8x6xi32> to vector<8x1xi32>
    %34 = vector.broadcast %33 : vector<8x1xi32> to vector<8x128xi32>
    %35 = arith.cmpi eq, %1, %34 : vector<8x128xi32>
    %36 = arith.extui %35 : vector<8x128xi1> to vector<8x128xi32>
    %37 = arith.sitofp %36 : vector<8x128xi32> to vector<8x128xf32>
    %38 = arith.truncf %37 : vector<8x128xf32> to vector<8x128xbf16>
    %c3 = arith.constant 3 : index
    %c0_11 = arith.constant 0 : index
    %c0_12 = arith.constant 0 : index
    %39 = vector.load %arg2[%c3, %c0_11, %c0_12] : memref<6x128x128xbf16, #tpu.memory_space<vmem>>, vector<1x128x128xbf16>
    %40 = vector.shape_cast %39 : vector<1x128x128xbf16> to vector<128x128xbf16>
    %cst_13 = arith.constant dense<0.000000e+00> : vector<8x128xf32>
    %41 = tpu.matmul %38, %40, %cst_13 {dimension_numbers = #tpu.dot_dimension_numbers<[1], [0], [0], [1], [0, 0, 1, 1], [], []>} : vector<8x128xbf16>, vector<128x128xbf16>, vector<8x128xf32> -> vector<8x128xf32>
    %42 = arith.addf %32, %41 : vector<8x128xf32>
    %43 = vector.extract_strided_slice %0 {offsets = [0, 4], sizes = [8, 1], strides = [1, 1]} : vector<8x6xi32> to vector<8x1xi32>
    %44 = vector.broadcast %43 : vector<8x1xi32> to vector<8x128xi32>
    %45 = arith.cmpi eq, %1, %44 : vector<8x128xi32>
    %46 = arith.extui %45 : vector<8x128xi1> to vector<8x128xi32>
    %47 = arith.sitofp %46 : vector<8x128xi32> to vector<8x128xf32>
    %48 = arith.truncf %47 : vector<8x128xf32> to vector<8x128xbf16>
    %c4 = arith.constant 4 : index
    %c0_14 = arith.constant 0 : index
    %c0_15 = arith.constant 0 : index
    %49 = vector.load %arg2[%c4, %c0_14, %c0_15] : memref<6x128x128xbf16, #tpu.memory_space<vmem>>, vector<1x128x128xbf16>
    %50 = vector.shape_cast %49 : vector<1x128x128xbf16> to vector<128x128xbf16>
    %cst_16 = arith.constant dense<0.000000e+00> : vector<8x128xf32>
    %51 = tpu.matmul %48, %50, %cst_16 {dimension_numbers = #tpu.dot_dimension_numbers<[1], [0], [0], [1], [0, 0, 1, 1], [], []>} : vector<8x128xbf16>, vector<128x128xbf16>, vector<8x128xf32> -> vector<8x128xf32>
    %52 = arith.addf %42, %51 : vector<8x128xf32>
    %53 = vector.extract_strided_slice %0 {offsets = [0, 5], sizes = [8, 1], strides = [1, 1]} : vector<8x6xi32> to vector<8x1xi32>
    %54 = vector.broadcast %53 : vector<8x1xi32> to vector<8x128xi32>
    %55 = arith.cmpi eq, %1, %54 : vector<8x128xi32>
    %56 = arith.extui %55 : vector<8x128xi1> to vector<8x128xi32>
    %57 = arith.sitofp %56 : vector<8x128xi32> to vector<8x128xf32>
    %58 = arith.truncf %57 : vector<8x128xf32> to vector<8x128xbf16>
    %c5 = arith.constant 5 : index
    %c0_17 = arith.constant 0 : index
    %c0_18 = arith.constant 0 : index
    %59 = vector.load %arg2[%c5, %c0_17, %c0_18] : memref<6x128x128xbf16, #tpu.memory_space<vmem>>, vector<1x128x128xbf16>
    %60 = vector.shape_cast %59 : vector<1x128x128xbf16> to vector<128x128xbf16>
    %cst_19 = arith.constant dense<0.000000e+00> : vector<8x128xf32>
    %61 = tpu.matmul %58, %60, %cst_19 {dimension_numbers = #tpu.dot_dimension_numbers<[1], [0], [0], [1], [0, 0, 1, 1], [], []>} : vector<8x128xbf16>, vector<128x128xbf16>, vector<8x128xf32> -> vector<8x128xf32>
    %62 = arith.addf %52, %61 : vector<8x128xf32>
    %c0_20 = arith.constant 0 : index
    %c0_21 = arith.constant 0 : index
    %63 = vector.load %arg3[%c0_20, %c0_21] : memref<1x128xf32, #tpu.memory_space<vmem>>, vector<1x128xf32>
    %64 = vector.broadcast %63 : vector<1x128xf32> to vector<8x128xf32>
    %65 = arith.addf %62, %64 : vector<8x128xf32>
    %cst_22 = arith.constant 0.000000e+00 : f32
    %66 = vector.broadcast %cst_22 : f32 to vector<8x128xf32>
    %67 = arith.maximumf %65, %66 : vector<8x128xf32>
    %68 = arith.truncf %67 : vector<8x128xf32> to vector<8x128xbf16>
    %c0_23 = arith.constant 0 : index
    %c0_24 = arith.constant 0 : index
    %69 = vector.load %arg4[%c0_23, %c0_24] : memref<128x128xbf16, #tpu.memory_space<vmem>>, vector<128x128xbf16>
    %cst_25 = arith.constant dense<0.000000e+00> : vector<8x128xf32>
    %70 = tpu.matmul %68, %69, %cst_25 {dimension_numbers = #tpu.dot_dimension_numbers<[1], [0], [0], [1], [0, 0, 1, 1], [], []>} : vector<8x128xbf16>, vector<128x128xbf16>, vector<8x128xf32> -> vector<8x128xf32>
    %c0_26 = arith.constant 0 : index
    %c0_27 = arith.constant 0 : index
    %71 = vector.load %arg5[%c0_26, %c0_27] : memref<1x128xf32, #tpu.memory_space<vmem>>, vector<1x128xf32>
    %72 = vector.broadcast %71 : vector<1x128xf32> to vector<8x128xf32>
    %73 = arith.addf %70, %72 : vector<8x128xf32>
    %cst_28 = arith.constant 0.000000e+00 : f32
    %74 = vector.broadcast %cst_28 : f32 to vector<8x128xf32>
    %75 = arith.maximumf %73, %74 : vector<8x128xf32>
    %76 = arith.truncf %75 : vector<8x128xf32> to vector<8x128xbf16>
    %c0_29 = arith.constant 0 : index
    %c0_30 = arith.constant 0 : index
    %77 = vector.load %arg6[%c0_29, %c0_30] : memref<128x128xbf16, #tpu.memory_space<vmem>>, vector<128x128xbf16>
    %cst_31 = arith.constant dense<0.000000e+00> : vector<8x128xf32>
    %78 = tpu.matmul %76, %77, %cst_31 {dimension_numbers = #tpu.dot_dimension_numbers<[1], [0], [0], [1], [0, 0, 1, 1], [], []>} : vector<8x128xbf16>, vector<128x128xbf16>, vector<8x128xf32> -> vector<8x128xf32>
    %c0_32 = arith.constant 0 : index
    %c0_33 = arith.constant 0 : index
    %79 = vector.load %arg7[%c0_32, %c0_33] : memref<1x128xf32, #tpu.memory_space<vmem>>, vector<1x128xf32>
    %80 = vector.broadcast %79 : vector<1x128xf32> to vector<8x128xf32>
    %81 = arith.addf %78, %80 : vector<8x128xf32>
    %cst_34 = arith.constant dense<0xFF800000> : vector<8xf32>
    %82 = vector.multi_reduction <maximumf>, %81, %cst_34 [1] : vector<8x128xf32> to vector<8xf32>
    %83 = vector.shape_cast %82 : vector<8xf32> to vector<8x1xf32>
    %84 = vector.broadcast %83 : vector<8x1xf32> to vector<8x128xf32>
    %85 = arith.subf %81, %84 : vector<8x128xf32>
    %86 = math.exp %85 : vector<8x128xf32>
    %cst_35 = arith.constant dense<0.000000e+00> : vector<8xf32>
    %87 = vector.multi_reduction <add>, %86, %cst_35 [1] : vector<8x128xf32> to vector<8xf32>
    %88 = vector.shape_cast %87 : vector<8xf32> to vector<8x1xf32>
    %89 = tpu.reciprocal %88 {approx = true} : vector<8x1xf32> -> vector<8x1xf32>
    %90 = vector.broadcast %89 : vector<8x1xf32> to vector<8x128xf32>
    %91 = arith.mulf %86, %90 : vector<8x128xf32>
    %c0_36 = arith.constant 0 : index
    %c0_37 = arith.constant 0 : index
    %92 = vector.load %arg8[%c0_36, %c0_37] : memref<8x128xf32, #tpu.memory_space<vmem>>, vector<8x128xf32>
    tpu.vector_store %arg8[%c0_36, %c0_37], %91 {strides = array<i32>} : memref<8x128xf32, #tpu.memory_space<vmem>>, vector<8x128xf32>,
    return
  }
  func.func @transform_0(%arg0: i32) -> (i32, i32) {
    %c0_i32 = arith.constant 0 : i32
    %c0_i32_0 = arith.constant 0 : i32
    return %arg0, %c0_i32 : i32, i32
  }
  func.func @transform_1(%arg0: i32) -> (i32, i32, i32) {
    %c0_i32 = arith.constant 0 : i32
    %c0_i32_0 = arith.constant 0 : i32
    %c0_i32_1 = arith.constant 0 : i32
    %c0_i32_2 = arith.constant 0 : i32
    return %c0_i32, %c0_i32_0, %c0_i32_1 : i32, i32, i32
  }
  func.func @transform_2(%arg0: i32) -> (i32, i32) {
    %c0_i32 = arith.constant 0 : i32
    %c0_i32_0 = arith.constant 0 : i32
    %c0_i32_1 = arith.constant 0 : i32
    return %c0_i32, %c0_i32_0 : i32, i32
  }
  func.func @transform_3(%arg0: i32) -> (i32, i32) {
    %c0_i32 = arith.constant 0 : i32
    %c0_i32_0 = arith.constant 0 : i32
    %c0_i32_1 = arith.constant 0 : i32
    return %c0_i32, %c0_i32_0 : i32, i32
  }
  func.func @transform_4(%arg0: i32) -> (i32, i32) {
    %c0_i32 = arith.constant 0 : i32
    %c0_i32_0 = arith.constant 0 : i32
    %c0_i32_1 = arith.constant 0 : i32
    return %c0_i32, %c0_i32_0 : i32, i32
  }
  func.func @transform_5(%arg0: i32) -> (i32, i32) {
    %c0_i32 = arith.constant 0 : i32
    %c0_i32_0 = arith.constant 0 : i32
    %c0_i32_1 = arith.constant 0 : i32
    return %c0_i32, %c0_i32_0 : i32, i32
  }
  func.func @transform_6(%arg0: i32) -> (i32, i32) {
    %c0_i32 = arith.constant 0 : i32
    %c0_i32_0 = arith.constant 0 : i32
    %c0_i32_1 = arith.constant 0 : i32
    return %c0_i32, %c0_i32_0 : i32, i32
  }
  func.func @transform_7(%arg0: i32) -> (i32, i32) {
    %c0_i32 = arith.constant 0 : i32
    %c0_i32_0 = arith.constant 0 : i32
    return %arg0, %c0_i32 : i32, i32
  }
}

</mosaic_0001>

<llo_original>
// kernel: tpu_custom_call.1
$region0: #{tpu_custom_call.1}
  #allocation0 [shape = 'u32[]', space=smem, size = 0x4, offset = 0x4, fixed_abs, tag = 'smem constant byte address 0x4 - core index']
  #allocation1 [shape = 'u32[144,128]{1,0:T(1,128)}', space=vmem, size = 0x12000, scoped, tag = 'internal scratch']
  %s0 = inlined_call_operand.hbm [shape: s32[8,6], index: 0, kind: input, shape index: {}]
  %s1 = inlined_call_operand.hbm [shape: bf16[6,128,128], index: 1, kind: input, shape index: {}]
  %s2 = inlined_call_operand.vmem [shape: f32[1,128], index: 2, kind: input, shape index: {}]
  %s3 = inlined_call_operand.hbm [shape: bf16[128,128], index: 3, kind: input, shape index: {}]
  %s4 = inlined_call_operand.vmem [shape: f32[1,128], index: 4, kind: input, shape index: {}]
  %s5 = inlined_call_operand.hbm [shape: bf16[128,128], index: 5, kind: input, shape index: {}]
  %s6 = inlined_call_operand.vmem [shape: f32[1,128], index: 6, kind: input, shape index: {}]
  %s7 = inlined_call_operand.hbm [shape: f32[8,128], index: 7, kind: output, shape index: {}]
  %s8 = sld [smem:[#allocation0]]
  $region54: #{tpu_custom_call.1} parent=0
    _
  %s10 = ssub.s32 1, %s8
  %s11 = scalar_select 0, %s10, %s8
  $region1: #{tpu_custom_call.1} parent=0
    #allocation2 [shape = 'u8[4096]{0}', space=vmem, size = 0x1000, scoped, tag = 'input window, operand 0, single buffered']
    #allocation3 [shape = 's32[1]{0}', space=sflag, size = 0x4, scoped, tag = 'scoped memory for tpu_custom_call.1']
    #allocation4 [shape = 's32[1]{0}', space=sflag, size = 0x4, scoped, tag = 'scoped memory for tpu_custom_call.1']
    #allocation5 [shape = 'u8[196608]{0}', space=vmem, size = 0x30000, scoped, tag = 'input window, operand 1, single buffered']
    #allocation6 [shape = 's32[1]{0}', space=sflag, size = 0x4, scoped, tag = 'scoped memory for tpu_custom_call.1']
    #allocation7 [shape = 'u8[32768]{0}', space=vmem, size = 0x8000, scoped, tag = 'input window, operand 3, single buffered']
    #allocation8 [shape = 'u8[32768]{0}', space=vmem, size = 0x8000, scoped, tag = 'input window, operand 5, single buffered']
    #allocation9 [shape = 's32[1]{0}', space=sflag, size = 0x4, scoped, tag = 'scoped memory for tpu_custom_call.1']
    #allocation10 [shape = 'u8[4096]{0}', space=vmem, size = 0x1000, scoped, tag = 'output window, operand 0, single buffered']
    %12 = vsyncpa [#allocation3], 0
    %13 = vsyncpa [#allocation6], 0
    %14 = vsyncpa [#allocation9], 0
    %15 = vsyncpa [#allocation4], 0
    // Predicated region
    $region2: #{tpu_custom_call.1} parent=1 // pred_check
      _
    $region3: #{tpu_custom_call.1} parent=1 // pred_check_branch
      %17 = sbr.rel (0) target = $region5
    $region4: #{tpu_custom_call.1} parent=1 // pred_region
      %s19 = ssub.s32 128, 128
      %20 = vsyncadd [#allocation3], %s19
      %s22 = sshll.u32 [#allocation2], 4
      %s23 = int_to_ptr.vmem [resolvable:$true] %s22
      %25 = dma.hbm_to_vmem [thread:$0]  %s0, 128, %s23, [#allocation3]
    $region5: #{tpu_custom_call.1} parent=1 // pred_fallthru
      _
    // Predicated region
    $region6: #{tpu_custom_call.1} parent=1 // pred_check
      _
    $region7: #{tpu_custom_call.1} parent=1 // pred_check_branch
      %27 = sbr.rel (0) target = $region9
    $region8: #{tpu_custom_call.1} parent=1 // pred_region
      %s29 = ssub.s32 6144, 6144
      %30 = vsyncadd [#allocation6], %s29
      %s31 = sshll.u32 [#allocation5], 4
      %s32 = int_to_ptr.vmem [resolvable:$true] %s31
      %37 = dma.hbm_to_vmem [thread:$0]  %s1, 6144, %s32, [#allocation6], 64, 64, 4
    $region9: #{tpu_custom_call.1} parent=1 // pred_fallthru
      _
    // Predicated region
    $region10: #{tpu_custom_call.1} parent=1 // pred_check
      _
    $region11: #{tpu_custom_call.1} parent=1 // pred_check_branch
      %39 = sbr.rel (0) target = $region13
    $region12: #{tpu_custom_call.1} parent=1 // pred_region
      _
    $region13: #{tpu_custom_call.1} parent=1 // pred_fallthru
      _
    // Predicated region
    $region14: #{tpu_custom_call.1} parent=1 // pred_check
      _
    $region15: #{tpu_custom_call.1} parent=1 // pred_check_branch
      %41 = sbr.rel (0) target = $region17
    $region16: #{tpu_custom_call.1} parent=1 // pred_region
      %s43 = ssub.s32 1024, 1024
      %44 = vsyncadd [#allocation6], %s43
      %s45 = sshll.u32 [#allocation7], 4
      %s46 = int_to_ptr.vmem [resolvable:$true] %s45
      %51 = dma.hbm_to_vmem [thread:$0]  %s3, 1024, %s46, [#allocation6], 64, 64, 4
    $region17: #{tpu_custom_call.1} parent=1 // pred_fallthru
      _
    // Predicated region
    $region18: #{tpu_custom_call.1} parent=1 // pred_check
      _
    $region19: #{tpu_custom_call.1} parent=1 // pred_check_branch
      %53 = sbr.rel (0) target = $region21
    $region20: #{tpu_custom_call.1} parent=1 // pred_region
      _
    $region21: #{tpu_custom_call.1} parent=1 // pred_fallthru
      _
    // Predicated region
    $region22: #{tpu_custom_call.1} parent=1 // pred_check
      _
    $region23: #{tpu_custom_call.1} parent=1 // pred_check_branch
      %55 = sbr.rel (0) target = $region25
    $region24: #{tpu_custom_call.1} parent=1 // pred_region
      %s57 = ssub.s32 1024, 1024
      %58 = vsyncadd [#allocation9], %s57
      %s59 = sshll.u32 [#allocation8], 4
      %s60 = int_to_ptr.vmem [resolvable:$true] %s59
      %65 = dma.hbm_to_vmem [thread:$0]  %s5, 1024, %s60, [#allocation9], 64, 64, 4
    $region25: #{tpu_custom_call.1} parent=1 // pred_fallthru
      _
    // Predicated region
    $region26: #{tpu_custom_call.1} parent=1 // pred_check
      _
    $region27: #{tpu_custom_call.1} parent=1 // pred_check_branch
      %67 = sbr.rel (0) target = $region29
    $region28: #{tpu_custom_call.1} parent=1 // pred_region
      _
    $region29: #{tpu_custom_call.1} parent=1 // pred_fallthru
      _
    // Predicated region
    $region30: #{tpu_custom_call.1} parent=1 // pred_check
      _
    $region31: #{tpu_custom_call.1} parent=1 // pred_check_branch
      %69 = sbr.rel (0) target = $region33
    $region32: #{tpu_custom_call.1} parent=1 // pred_region
      %70 = dma.done [#allocation3], 128
    $region33: #{tpu_custom_call.1} parent=1 // pred_fallthru
      _
    // Predicated region
    $region34: #{tpu_custom_call.1} parent=1 // pred_check
      _
    $region35: #{tpu_custom_call.1} parent=1 // pred_check_branch
      %72 = sbr.rel (0) target = $region37
    $region36: #{tpu_custom_call.1} parent=1 // pred_region
      %73 = dma.done [#allocation6], 6144
    $region37: #{tpu_custom_call.1} parent=1 // pred_fallthru
      _
    // Predicated region
    $region38: #{tpu_custom_call.1} parent=1 // pred_check
      _
    $region39: #{tpu_custom_call.1} parent=1 // pred_check_branch
      %75 = sbr.rel (0) target = $region41
    $region40: #{tpu_custom_call.1} parent=1 // pred_region
      %76 = dma.done [#allocation6], 1024
    $region41: #{tpu_custom_call.1} parent=1 // pred_fallthru
      _
    // Predicated region
    $region42: #{tpu_custom_call.1} parent=1 // pred_check
      _
    $region43: #{tpu_custom_call.1} parent=1 // pred_check_branch
      %78 = sbr.rel (0) target = $region45
    $region44: #{tpu_custom_call.1} parent=1 // pred_region
      %79 = dma.done [#allocation9], 1024
    $region45: #{tpu_custom_call.1} parent=1 // pred_fallthru
      _
    %v81 = vld [vmem:[#allocation2] sm:$0xff]
    %v82 = vlaneseq
    %v83 = vand.u32 %v82, 127
    %84 = vset.pattern.permute.xlu0 0
    %85 = vperm.xlu0 %84, %v81
    %v86 = vpop.permute.xlu0 %85
    %vm87 = vcmp.eq.s32.totalorder %v83, %v86
    %v88 = vsel %vm87, 1, 0
    %v89 = vcvt.s32.f32 %v88
    %v90 = vpack.c.bf16 %v89, %v89
    %v91 = vld [vmem:[#allocation5] sm:$0xf]
    %v92 = vld [vmem:[#allocation5 + $0x4] sm:$0xf]
    %v93 = vld [vmem:[#allocation5 + $0x8] sm:$0xf]
    %v94 = vld [vmem:[#allocation5 + $0xc] sm:$0xf]
    %v95 = vld [vmem:[#allocation5 + $0x10] sm:$0xf]
    %v96 = vld [vmem:[#allocation5 + $0x14] sm:$0xf]
    %v97 = vld [vmem:[#allocation5 + $0x18] sm:$0xf]
    %v98 = vld [vmem:[#allocation5 + $0x1c] sm:$0xf]
    %v99 = vld [vmem:[#allocation5 + $0x20] sm:$0xf]
    %v100 = vld [vmem:[#allocation5 + $0x24] sm:$0xf]
    %v101 = vld [vmem:[#allocation5 + $0x28] sm:$0xf]
    %v102 = vld [vmem:[#allocation5 + $0x2c] sm:$0xf]
    %v103 = vld [vmem:[#allocation5 + $0x30] sm:$0xf]
    %v104 = vld [vmem:[#allocation5 + $0x34] sm:$0xf]
    %v105 = vld [vmem:[#allocation5 + $0x38] sm:$0xf]
    %v106 = vld [vmem:[#allocation5 + $0x3c] sm:$0xf]
    %107 = vset.pattern.permute.xlu0 1
    %108 = vperm.xlu0 %107, %v81
    %v109 = vpop.permute.xlu0 %108
    %vm110 = vcmp.eq.s32.totalorder %v83, %v109
    %v111 = vsel %vm110, 1, 0
    %v112 = vcvt.s32.f32 %v111
    %v113 = vpack.c.bf16 %v112, %v112
    %s114 = scalar_lea.vmem [#allocation5], 64
    %v115 = vld [vmem:[%s114] sm:$0xf]
    %v116 = vld [vmem:[%s114 + $0x4] sm:$0xf]
    %v117 = vld [vmem:[%s114 + $0x8] sm:$0xf]
    %v118 = vld [vmem:[%s114 + $0xc] sm:$0xf]
    %v119 = vld [vmem:[%s114 + $0x10] sm:$0xf]
    %v120 = vld [vmem:[%s114 + $0x14] sm:$0xf]
    %v121 = vld [vmem:[%s114 + $0x18] sm:$0xf]
    %v122 = vld [vmem:[%s114 + $0x1c] sm:$0xf]
    %v123 = vld [vmem:[%s114 + $0x20] sm:$0xf]
    %v124 = vld [vmem:[%s114 + $0x24] sm:$0xf]
    %v125 = vld [vmem:[%s114 + $0x28] sm:$0xf]
    %v126 = vld [vmem:[%s114 + $0x2c] sm:$0xf]
    %v127 = vld [vmem:[%s114 + $0x30] sm:$0xf]
    %v128 = vld [vmem:[%s114 + $0x34] sm:$0xf]
    %v129 = vld [vmem:[%s114 + $0x38] sm:$0xf]
    %v130 = vld [vmem:[%s114 + $0x3c] sm:$0xf]
    %v147 = vunpack.c.l.b16 %v115
    %v148 = vunpack.c.l.b16 %v116
    %v149 = vunpack.c.l.b16 %v117
    %v150 = vunpack.c.l.b16 %v118
    %v151 = vunpack.c.l.b16 %v119
    %v152 = vunpack.c.l.b16 %v120
    %v153 = vunpack.c.l.b16 %v121
    %v154 = vunpack.c.l.b16 %v122
    %v155 = vunpack.c.l.b16 %v123
    %v156 = vunpack.c.l.b16 %v124
    %v157 = vunpack.c.l.b16 %v125
    %v158 = vunpack.c.l.b16 %v126
    %v159 = vunpack.c.l.b16 %v127
    %v160 = vunpack.c.l.b16 %v128
    %v161 = vunpack.c.l.b16 %v129
    %v162 = vunpack.c.l.b16 %v130
    %v163 = vpack.c.b16 %v148, %v147
    %v164 = vpack.c.b16 %v150, %v149
    %v165 = vpack.c.b16 %v152, %v151
    %v166 = vpack.c.b16 %v154, %v153
    %v167 = vpack.c.b16 %v156, %v155
    %v168 = vpack.c.b16 %v158, %v157
    %v169 = vpack.c.b16 %v160, %v159
    %v170 = vpack.c.b16 %v162, %v161
    %179 = vmatprep.subr.bf16.mxu0 0
    %180 = vmatpush1.bf16.msra.mxu0 %v170
    %181 = vmatprep.subr.bf16.mxu0 0
    %182 = vmatpush1.bf16.msra.mxu0 %v169
    %183 = vmatprep.subr.bf16.mxu0 0
    %184 = vmatpush1.bf16.msra.mxu0 %v168
    %185 = vmatprep.subr.bf16.mxu0 0
    %186 = vmatpush1.bf16.msra.mxu0 %v167
    %187 = vmatprep.subr.bf16.mxu0 0
    %188 = vmatpush1.bf16.msra.mxu0 %v166
    %189 = vmatprep.subr.bf16.mxu0 0
    %190 = vmatpush1.bf16.msra.mxu0 %v165
    %191 = vmatprep.subr.bf16.mxu0 0
    %192 = vmatpush1.bf16.msra.mxu0 %v164
    %193 = vmatprep.subr.bf16.mxu0 0
    %194 = vmatpush1.bf16.msra.mxu0 %v163
    %195 = vmatprep.subr.bf16.mxu0 0
    %196 = vmatpush2.bf16.msra.mxu0 0
    %197 = vmatprep.subr.bf16.mxu0 0
    %198 = vmatpush2.bf16.msra.mxu0 0
    %199 = vmatprep.subr.bf16.mxu0 0
    %200 = vmatpush2.bf16.msra.mxu0 0
    %201 = vmatprep.subr.bf16.mxu0 0
    %202 = vmatpush2.bf16.msra.mxu0 0
    %203 = vmatprep.subr.bf16.mxu0 0
    %204 = vmatpush2.bf16.msra.mxu0 0
    %205 = vmatprep.subr.bf16.mxu0 0
    %206 = vmatpush2.bf16.msra.mxu0 0
    %207 = vmatprep.subr.bf16.mxu0 0
    %208 = vmatpush2.bf16.msra.mxu0 0
    %209 = vmatprep.subr.bf16.mxu0 0
    %210 = vmatpush2.bf16.msra.mxu0 0
    %211 = vmatprep.mubr.bf16.mxu0 0
    %212 = vmatmul.mubr.bf16.gmra.mxu0 %v113
    %v213 = vpop.f32.mrf.mxu0
    %v214 = vadd.f32 0.0, %v213
    %v215 = vpop.f32.mrf.mxu0
    %v216 = vpop.f32.mrf.mxu0
    %v217 = vpop.f32.mrf.mxu0
    %218 = vdwg.mxu0
    %v235 = vunpack.c.l.b16 %v91
    %v236 = vunpack.c.l.b16 %v92
    %v237 = vunpack.c.l.b16 %v93
    %v238 = vunpack.c.l.b16 %v94
    %v239 = vunpack.c.l.b16 %v95
    %v240 = vunpack.c.l.b16 %v96
    %v241 = vunpack.c.l.b16 %v97
    %v242 = vunpack.c.l.b16 %v98
    %v243 = vunpack.c.l.b16 %v99
    %v244 = vunpack.c.l.b16 %v100
    %v245 = vunpack.c.l.b16 %v101
    %v246 = vunpack.c.l.b16 %v102
    %v247 = vunpack.c.l.b16 %v103
    %v248 = vunpack.c.l.b16 %v104
    %v249 = vunpack.c.l.b16 %v105
    %v250 = vunpack.c.l.b16 %v106
    %v251 = vpack.c.b16 %v236, %v235
    %v252 = vpack.c.b16 %v238, %v237
    %v253 = vpack.c.b16 %v240, %v239
    %v254 = vpack.c.b16 %v242, %v241
    %v255 = vpack.c.b16 %v244, %v243
    %v256 = vpack.c.b16 %v246, %v245
    %v257 = vpack.c.b16 %v248, %v247
    %v258 = vpack.c.b16 %v250, %v249
    %267 = vmatprep.subr.bf16.mxu0 0
    %268 = vmatpush1.bf16.msra.mxu0 %v258
    %269 = vmatprep.subr.bf16.mxu0 0
    %270 = vmatpush1.bf16.msra.mxu0 %v257
    %271 = vmatprep.subr.bf16.mxu0 0
    %272 = vmatpush1.bf16.msra.mxu0 %v256
    %273 = vmatprep.subr.bf16.mxu0 0
    %274 = vmatpush1.bf16.msra.mxu0 %v255
    %275 = vmatprep.subr.bf16.mxu0 0
    %276 = vmatpush1.bf16.msra.mxu0 %v254
    %277 = vmatprep.subr.bf16.mxu0 0
    %278 = vmatpush1.bf16.msra.mxu0 %v253
    %279 = vmatprep.subr.bf16.mxu0 0
    %280 = vmatpush1.bf16.msra.mxu0 %v252
    %281 = vmatprep.subr.bf16.mxu0 0
    %282 = vmatpush1.bf16.msra.mxu0 %v251
    %283 = vmatprep.subr.bf16.mxu0 0
    %284 = vmatpush2.bf16.msra.mxu0 0
    %285 = vmatprep.subr.bf16.mxu0 0
    %286 = vmatpush2.bf16.msra.mxu0 0
    %287 = vmatprep.subr.bf16.mxu0 0
    %288 = vmatpush2.bf16.msra.mxu0 0
    %289 = vmatprep.subr.bf16.mxu0 0
    %290 = vmatpush2.bf16.msra.mxu0 0
    %291 = vmatprep.subr.bf16.mxu0 0
    %292 = vmatpush2.bf16.msra.mxu0 0
    %293 = vmatprep.subr.bf16.mxu0 0
    %294 = vmatpush2.bf16.msra.mxu0 0
    %295 = vmatprep.subr.bf16.mxu0 0
    %296 = vmatpush2.bf16.msra.mxu0 0
    %297 = vmatprep.subr.bf16.mxu0 0
    %298 = vmatpush2.bf16.msra.mxu0 0
    %299 = vmatprep.mubr.bf16.mxu0 0
    %300 = vmatmul.mubr.bf16.gmra.mxu0 %v90
    %v301 = vpop.f32.mrf.mxu0
    %v302 = vadd.f32 %v214, %v301
    %v303 = vpop.f32.mrf.mxu0
    %v304 = vpop.f32.mrf.mxu0
    %v305 = vpop.f32.mrf.mxu0
    %306 = vdwg.mxu0
    %307 = vset.pattern.permute.xlu0 2
    %308 = vperm.xlu0 %307, %v81
    %v309 = vpop.permute.xlu0 %308
    %vm310 = vcmp.eq.s32.totalorder %v83, %v309
    %v311 = vsel %vm310, 1, 0
    %v312 = vcvt.s32.f32 %v311
    %v313 = vpack.c.bf16 %v312, %v312
    %s314 = scalar_lea.vmem [#allocation5], 128
    %v315 = vld [vmem:[%s314] sm:$0xf]
    %v316 = vld [vmem:[%s314 + $0x4] sm:$0xf]
    %v317 = vld [vmem:[%s314 + $0x8] sm:$0xf]
    %v318 = vld [vmem:[%s314 + $0xc] sm:$0xf]
    %v319 = vld [vmem:[%s314 + $0x10] sm:$0xf]
    %v320 = vld [vmem:[%s314 + $0x14] sm:$0xf]
    %v321 = vld [vmem:[%s314 + $0x18] sm:$0xf]
    %v322 = vld [vmem:[%s314 + $0x1c] sm:$0xf]
    %v323 = vld [vmem:[%s314 + $0x20] sm:$0xf]
    %v324 = vld [vmem:[%s314 + $0x24] sm:$0xf]
    %v325 = vld [vmem:[%s314 + $0x28] sm:$0xf]
    %v326 = vld [vmem:[%s314 + $0x2c] sm:$0xf]
    %v327 = vld [vmem:[%s314 + $0x30] sm:$0xf]
    %v328 = vld [vmem:[%s314 + $0x34] sm:$0xf]
    %v329 = vld [vmem:[%s314 + $0x38] sm:$0xf]
    %v330 = vld [vmem:[%s314 + $0x3c] sm:$0xf]
    %v347 = vunpack.c.l.b16 %v315
    %v348 = vunpack.c.l.b16 %v316
    %v349 = vunpack.c.l.b16 %v317
    %v350 = vunpack.c.l.b16 %v318
    %v351 = vunpack.c.l.b16 %v319
    %v352 = vunpack.c.l.b16 %v320
    %v353 = vunpack.c.l.b16 %v321
    %v354 = vunpack.c.l.b16 %v322
    %v355 = vunpack.c.l.b16 %v323
    %v356 = vunpack.c.l.b16 %v324
    %v357 = vunpack.c.l.b16 %v325
    %v358 = vunpack.c.l.b16 %v326
    %v359 = vunpack.c.l.b16 %v327
    %v360 = vunpack.c.l.b16 %v328
    %v361 = vunpack.c.l.b16 %v329
    %v362 = vunpack.c.l.b16 %v330
    %v363 = vpack.c.b16 %v348, %v347
    %v364 = vpack.c.b16 %v350, %v349
    %v365 = vpack.c.b16 %v352, %v351
    %v366 = vpack.c.b16 %v354, %v353
    %v367 = vpack.c.b16 %v356, %v355
    %v368 = vpack.c.b16 %v358, %v357
    %v369 = vpack.c.b16 %v360, %v359
    %v370 = vpack.c.b16 %v362, %v361
    %379 = vmatprep.subr.bf16.mxu0 0
    %380 = vmatpush1.bf16.msra.mxu0 %v370
    %381 = vmatprep.subr.bf16.mxu0 0
    %382 = vmatpush1.bf16.msra.mxu0 %v369
    %383 = vmatprep.subr.bf16.mxu0 0
    %384 = vmatpush1.bf16.msra.mxu0 %v368
    %385 = vmatprep.subr.bf16.mxu0 0
    %386 = vmatpush1.bf16.msra.mxu0 %v367
    %387 = vmatprep.subr.bf16.mxu0 0
    %388 = vmatpush1.bf16.msra.mxu0 %v366
    %389 = vmatprep.subr.bf16.mxu0 0
    %390 = vmatpush1.bf16.msra.mxu0 %v365
    %391 = vmatprep.subr.bf16.mxu0 0
    %392 = vmatpush1.bf16.msra.mxu0 %v364
    %393 = vmatprep.subr.bf16.mxu0 0
    %394 = vmatpush1.bf16.msra.mxu0 %v363
    %395 = vmatprep.subr.bf16.mxu0 0
    %396 = vmatpush2.bf16.msra.mxu0 0
    %397 = vmatprep.subr.bf16.mxu0 0
    %398 = vmatpush2.bf16.msra.mxu0 0
    %399 = vmatprep.subr.bf16.mxu0 0
    %400 = vmatpush2.bf16.msra.mxu0 0
    %401 = vmatprep.subr.bf16.mxu0 0
    %402 = vmatpush2.bf16.msra.mxu0 0
    %403 = vmatprep.subr.bf16.mxu0 0
    %404 = vmatpush2.bf16.msra.mxu0 0
    %405 = vmatprep.subr.bf16.mxu0 0
    %406 = vmatpush2.bf16.msra.mxu0 0
    %407 = vmatprep.subr.bf16.mxu0 0
    %408 = vmatpush2.bf16.msra.mxu0 0
    %409 = vmatprep.subr.bf16.mxu0 0
    %410 = vmatpush2.bf16.msra.mxu0 0
    %411 = vmatprep.mubr.bf16.mxu0 0
    %412 = vmatmul.mubr.bf16.gmra.mxu0 %v313
    %v413 = vpop.f32.mrf.mxu0
    %v414 = vadd.f32 0.0, %v413
    %v415 = vpop.f32.mrf.mxu0
    %v416 = vpop.f32.mrf.mxu0
    %v417 = vpop.f32.mrf.mxu0
    %418 = vdwg.mxu0
    %v419 = vadd.f32 %v302, %v414
    %420 = vset.pattern.permute.xlu0 3
    %421 = vperm.xlu0 %420, %v81
    %v422 = vpop.permute.xlu0 %421
    %vm423 = vcmp.eq.s32.totalorder %v83, %v422
    %v424 = vsel %vm423, 1, 0
    %v425 = vcvt.s32.f32 %v424
    %v426 = vpack.c.bf16 %v425, %v425
    %s427 = scalar_lea.vmem [#allocation5], 192
    %v428 = vld [vmem:[%s427] sm:$0xf]
    %v429 = vld [vmem:[%s427 + $0x4] sm:$0xf]
    %v430 = vld [vmem:[%s427 + $0x8] sm:$0xf]
    %v431 = vld [vmem:[%s427 + $0xc] sm:$0xf]
    %v432 = vld [vmem:[%s427 + $0x10] sm:$0xf]
    %v433 = vld [vmem:[%s427 + $0x14] sm:$0xf]
    %v434 = vld [vmem:[%s427 + $0x18] sm:$0xf]
    %v435 = vld [vmem:[%s427 + $0x1c] sm:$0xf]
    %v436 = vld [vmem:[%s427 + $0x20] sm:$0xf]
    %v437 = vld [vmem:[%s427 + $0x24] sm:$0xf]
    %v438 = vld [vmem:[%s427 + $0x28] sm:$0xf]
    %v439 = vld [vmem:[%s427 + $0x2c] sm:$0xf]
    %v440 = vld [vmem:[%s427 + $0x30] sm:$0xf]
    %v441 = vld [vmem:[%s427 + $0x34] sm:$0xf]
    %v442 = vld [vmem:[%s427 + $0x38] sm:$0xf]
    %v443 = vld [vmem:[%s427 + $0x3c] sm:$0xf]
    %v460 = vunpack.c.l.b16 %v428
    %v461 = vunpack.c.l.b16 %v429
    %v462 = vunpack.c.l.b16 %v430
    %v463 = vunpack.c.l.b16 %v431
    %v464 = vunpack.c.l.b16 %v432
    %v465 = vunpack.c.l.b16 %v433
    %v466 = vunpack.c.l.b16 %v434
    %v467 = vunpack.c.l.b16 %v435
    %v468 = vunpack.c.l.b16 %v436
    %v469 = vunpack.c.l.b16 %v437
    %v470 = vunpack.c.l.b16 %v438
    %v471 = vunpack.c.l.b16 %v439
    %v472 = vunpack.c.l.b16 %v440
    %v473 = vunpack.c.l.b16 %v441
    %v474 = vunpack.c.l.b16 %v442
    %v475 = vunpack.c.l.b16 %v443
    %v476 = vpack.c.b16 %v461, %v460
    %v477 = vpack.c.b16 %v463, %v462
    %v478 = vpack.c.b16 %v465, %v464
    %v479 = vpack.c.b16 %v467, %v466
    %v480 = vpack.c.b16 %v469, %v468
    %v481 = vpack.c.b16 %v471, %v470
    %v482 = vpack.c.b16 %v473, %v472
    %v483 = vpack.c.b16 %v475, %v474
    %492 = vmatprep.subr.bf16.mxu0 0
    %493 = vmatpush1.bf16.msra.mxu0 %v483
    %494 = vmatprep.subr.bf16.mxu0 0
    %495 = vmatpush1.bf16.msra.mxu0 %v482
    %496 = vmatprep.subr.bf16.mxu0 0
    %497 = vmatpush1.bf16.msra.mxu0 %v481
    %498 = vmatprep.subr.bf16.mxu0 0
    %499 = vmatpush1.bf16.msra.mxu0 %v480
    %500 = vmatprep.subr.bf16.mxu0 0
    %501 = vmatpush1.bf16.msra.mxu0 %v479
    %502 = vmatprep.subr.bf16.mxu0 0
    %503 = vmatpush1.bf16.msra.mxu0 %v478
    %504 = vmatprep.subr.bf16.mxu0 0
    %505 = vmatpush1.bf16.msra.mxu0 %v477
    %506 = vmatprep.subr.bf16.mxu0 0
    %507 = vmatpush1.bf16.msra.mxu0 %v476
    %508 = vmatprep.subr.bf16.mxu0 0
    %509 = vmatpush2.bf16.msra.mxu0 0
    %510 = vmatprep.subr.bf16.mxu0 0
    %511 = vmatpush2.bf16.msra.mxu0 0
    %512 = vmatprep.subr.bf16.mxu0 0
    %513 = vmatpush2.bf16.msra.mxu0 0
    %514 = vmatprep.subr.bf16.mxu0 0
    %515 = vmatpush2.bf16.msra.mxu0 0
    %516 = vmatprep.subr.bf16.mxu0 0
    %517 = vmatpush2.bf16.msra.mxu0 0
    %518 = vmatprep.subr.bf16.mxu0 0
    %519 = vmatpush2.bf16.msra.mxu0 0
    %520 = vmatprep.subr.bf16.mxu0 0
    %521 = vmatpush2.bf16.msra.mxu0 0
    %522 = vmatprep.subr.bf16.mxu0 0
    %523 = vmatpush2.bf16.msra.mxu0 0
    %524 = vmatprep.mubr.bf16.mxu0 0
    %525 = vmatmul.mubr.bf16.gmra.mxu0 %v426
    %v526 = vpop.f32.mrf.mxu0
    %v527 = vadd.f32 0.0, %v526
    %v528 = vpop.f32.mrf.mxu0
    %v529 = vpop.f32.mrf.mxu0
    %v530 = vpop.f32.mrf.mxu0
    %531 = vdwg.mxu0
    %v532 = vadd.f32 %v419, %v527
    %533 = vset.pattern.permute.xlu0 4
    %534 = vperm.xlu0 %533, %v81
    %v535 = vpop.permute.xlu0 %534
    %vm536 = vcmp.eq.s32.totalorder %v83, %v535
    %v537 = vsel %vm536, 1, 0
    %v538 = vcvt.s32.f32 %v537
    %v539 = vpack.c.bf16 %v538, %v538
    %s540 = scalar_lea.vmem [#allocation5], 256
    %v541 = vld [vmem:[%s540] sm:$0xf]
    %v542 = vld [vmem:[%s540 + $0x4] sm:$0xf]
    %v543 = vld [vmem:[%s540 + $0x8] sm:$0xf]
    %v544 = vld [vmem:[%s540 + $0xc] sm:$0xf]
    %v545 = vld [vmem:[%s540 + $0x10] sm:$0xf]
    %v546 = vld [vmem:[%s540 + $0x14] sm:$0xf]
    %v547 = vld [vmem:[%s540 + $0x18] sm:$0xf]
    %v548 = vld [vmem:[%s540 + $0x1c] sm:$0xf]
    %v549 = vld [vmem:[%s540 + $0x20] sm:$0xf]
    %v550 = vld [vmem:[%s540 + $0x24] sm:$0xf]
    %v551 = vld [vmem:[%s540 + $0x28] sm:$0xf]
    %v552 = vld [vmem:[%s540 + $0x2c] sm:$0xf]
    %v553 = vld [vmem:[%s540 + $0x30] sm:$0xf]
    %v554 = vld [vmem:[%s540 + $0x34] sm:$0xf]
    %v555 = vld [vmem:[%s540 + $0x38] sm:$0xf]
    %v556 = vld [vmem:[%s540 + $0x3c] sm:$0xf]
    %v573 = vunpack.c.l.b16 %v541
    %v574 = vunpack.c.l.b16 %v542
    %v575 = vunpack.c.l.b16 %v543
    %v576 = vunpack.c.l.b16 %v544
    %v577 = vunpack.c.l.b16 %v545
    %v578 = vunpack.c.l.b16 %v546
    %v579 = vunpack.c.l.b16 %v547
    %v580 = vunpack.c.l.b16 %v548
    %v581 = vunpack.c.l.b16 %v549
    %v582 = vunpack.c.l.b16 %v550
    %v583 = vunpack.c.l.b16 %v551
    %v584 = vunpack.c.l.b16 %v552
    %v585 = vunpack.c.l.b16 %v553
    %v586 = vunpack.c.l.b16 %v554
    %v587 = vunpack.c.l.b16 %v555
    %v588 = vunpack.c.l.b16 %v556
    %v589 = vpack.c.b16 %v574, %v573
    %v590 = vpack.c.b16 %v576, %v575
    %v591 = vpack.c.b16 %v578, %v577
    %v592 = vpack.c.b16 %v580, %v579
    %v593 = vpack.c.b16 %v582, %v581
    %v594 = vpack.c.b16 %v584, %v583
    %v595 = vpack.c.b16 %v586, %v585
    %v596 = vpack.c.b16 %v588, %v587
    %605 = vmatprep.subr.bf16.mxu0 0
    %606 = vmatpush1.bf16.msra.mxu0 %v596
    %607 = vmatprep.subr.bf16.mxu0 0
    %608 = vmatpush1.bf16.msra.mxu0 %v595
    %609 = vmatprep.subr.bf16.mxu0 0
    %610 = vmatpush1.bf16.msra.mxu0 %v594
    %611 = vmatprep.subr.bf16.mxu0 0
    %612 = vmatpush1.bf16.msra.mxu0 %v593
    %613 = vmatprep.subr.bf16.mxu0 0
    %614 = vmatpush1.bf16.msra.mxu0 %v592
    %615 = vmatprep.subr.bf16.mxu0 0
    %616 = vmatpush1.bf16.msra.mxu0 %v591
    %617 = vmatprep.subr.bf16.mxu0 0
    %618 = vmatpush1.bf16.msra.mxu0 %v590
    %619 = vmatprep.subr.bf16.mxu0 0
    %620 = vmatpush1.bf16.msra.mxu0 %v589
    %621 = vmatprep.subr.bf16.mxu0 0
    %622 = vmatpush2.bf16.msra.mxu0 0
    %623 = vmatprep.subr.bf16.mxu0 0
    %624 = vmatpush2.bf16.msra.mxu0 0
    %625 = vmatprep.subr.bf16.mxu0 0
    %626 = vmatpush2.bf16.msra.mxu0 0
    %627 = vmatprep.subr.bf16.mxu0 0
    %628 = vmatpush2.bf16.msra.mxu0 0
    %629 = vmatprep.subr.bf16.mxu0 0
    %630 = vmatpush2.bf16.msra.mxu0 0
    %631 = vmatprep.subr.bf16.mxu0 0
    %632 = vmatpush2.bf16.msra.mxu0 0
    %633 = vmatprep.subr.bf16.mxu0 0
    %634 = vmatpush2.bf16.msra.mxu0 0
    %635 = vmatprep.subr.bf16.mxu0 0
    %636 = vmatpush2.bf16.msra.mxu0 0
    %637 = vmatprep.mubr.bf16.mxu0 0
    %638 = vmatmul.mubr.bf16.gmra.mxu0 %v539
    %v639 = vpop.f32.mrf.mxu0
    %v640 = vadd.f32 0.0, %v639
    %v641 = vpop.f32.mrf.mxu0
    %v642 = vpop.f32.mrf.mxu0
    %v643 = vpop.f32.mrf.mxu0
    %644 = vdwg.mxu0
    %v645 = vadd.f32 %v532, %v640
    %646 = vset.pattern.permute.xlu0 5
    %647 = vperm.xlu0 %646, %v81
    %v648 = vpop.permute.xlu0 %647
    %vm649 = vcmp.eq.s32.totalorder %v83, %v648
    %v650 = vsel %vm649, 1, 0
    %v651 = vcvt.s32.f32 %v650
    %v652 = vpack.c.bf16 %v651, %v651
    %s653 = scalar_lea.vmem [#allocation5], 320
    %v654 = vld [vmem:[%s653] sm:$0xf]
    %v655 = vld [vmem:[%s653 + $0x4] sm:$0xf]
    %v656 = vld [vmem:[%s653 + $0x8] sm:$0xf]
    %v657 = vld [vmem:[%s653 + $0xc] sm:$0xf]
    %v658 = vld [vmem:[%s653 + $0x10] sm:$0xf]
    %v659 = vld [vmem:[%s653 + $0x14] sm:$0xf]
    %v660 = vld [vmem:[%s653 + $0x18] sm:$0xf]
    %v661 = vld [vmem:[%s653 + $0x1c] sm:$0xf]
    %v662 = vld [vmem:[%s653 + $0x20] sm:$0xf]
    %v663 = vld [vmem:[%s653 + $0x24] sm:$0xf]
    %v664 = vld [vmem:[%s653 + $0x28] sm:$0xf]
    %v665 = vld [vmem:[%s653 + $0x2c] sm:$0xf]
    %v666 = vld [vmem:[%s653 + $0x30] sm:$0xf]
    %v667 = vld [vmem:[%s653 + $0x34] sm:$0xf]
    %v668 = vld [vmem:[%s653 + $0x38] sm:$0xf]
    %v669 = vld [vmem:[%s653 + $0x3c] sm:$0xf]
    %v686 = vunpack.c.l.b16 %v654
    %v687 = vunpack.c.l.b16 %v655
    %v688 = vunpack.c.l.b16 %v656
    %v689 = vunpack.c.l.b16 %v657
    %v690 = vunpack.c.l.b16 %v658
    %v691 = vunpack.c.l.b16 %v659
    %v692 = vunpack.c.l.b16 %v660
    %v693 = vunpack.c.l.b16 %v661
    %v694 = vunpack.c.l.b16 %v662
    %v695 = vunpack.c.l.b16 %v663
    %v696 = vunpack.c.l.b16 %v664
    %v697 = vunpack.c.l.b16 %v665
    %v698 = vunpack.c.l.b16 %v666
    %v699 = vunpack.c.l.b16 %v667
    %v700 = vunpack.c.l.b16 %v668
    %v701 = vunpack.c.l.b16 %v669
    %v702 = vpack.c.b16 %v687, %v686
    %v703 = vpack.c.b16 %v689, %v688
    %v704 = vpack.c.b16 %v691, %v690
    %v705 = vpack.c.b16 %v693, %v692
    %v706 = vpack.c.b16 %v695, %v694
    %v707 = vpack.c.b16 %v697, %v696
    %v708 = vpack.c.b16 %v699, %v698
    %v709 = vpack.c.b16 %v701, %v700
    %718 = vmatprep.subr.bf16.mxu0 0
    %719 = vmatpush1.bf16.msra.mxu0 %v709
    %720 = vmatprep.subr.bf16.mxu0 0
    %721 = vmatpush1.bf16.msra.mxu0 %v708
    %722 = vmatprep.subr.bf16.mxu0 0
    %723 = vmatpush1.bf16.msra.mxu0 %v707
    %724 = vmatprep.subr.bf16.mxu0 0
    %725 = vmatpush1.bf16.msra.mxu0 %v706
    %726 = vmatprep.subr.bf16.mxu0 0
    %727 = vmatpush1.bf16.msra.mxu0 %v705
    %728 = vmatprep.subr.bf16.mxu0 0
    %729 = vmatpush1.bf16.msra.mxu0 %v704
    %730 = vmatprep.subr.bf16.mxu0 0
    %731 = vmatpush1.bf16.msra.mxu0 %v703
    %732 = vmatprep.subr.bf16.mxu0 0
    %733 = vmatpush1.bf16.msra.mxu0 %v702
    %734 = vmatprep.subr.bf16.mxu0 0
    %735 = vmatpush2.bf16.msra.mxu0 0
    %736 = vmatprep.subr.bf16.mxu0 0
    %737 = vmatpush2.bf16.msra.mxu0 0
    %738 = vmatprep.subr.bf16.mxu0 0
    %739 = vmatpush2.bf16.msra.mxu0 0
    %740 = vmatprep.subr.bf16.mxu0 0
    %741 = vmatpush2.bf16.msra.mxu0 0
    %742 = vmatprep.subr.bf16.mxu0 0
    %743 = vmatpush2.bf16.msra.mxu0 0
    %744 = vmatprep.subr.bf16.mxu0 0
    %745 = vmatpush2.bf16.msra.mxu0 0
    %746 = vmatprep.subr.bf16.mxu0 0
    %747 = vmatpush2.bf16.msra.mxu0 0
    %748 = vmatprep.subr.bf16.mxu0 0
    %749 = vmatpush2.bf16.msra.mxu0 0
    %750 = vmatprep.mubr.bf16.mxu0 0
    %751 = vmatmul.mubr.bf16.gmra.mxu0 %v652
    %v752 = vpop.f32.mrf.mxu0
    %v753 = vadd.f32 0.0, %v752
    %v754 = vpop.f32.mrf.mxu0
    %v755 = vpop.f32.mrf.mxu0
    %v756 = vpop.f32.mrf.mxu0
    %757 = vdwg.mxu0
    %v758 = vadd.f32 %v645, %v753
    %v759 = vld [vmem:[%s2] sm:$0x1]
    %v761 = vlaneseq
    %v762 = vshrl.u32 %v761, 7
    %v763 = vsub.s32 0, %v762
    %v764 = vrot.slane %v759, %v763
    %v766 = vadd.f32 %v758, %v764
    %v767 = vmax.f32 %v766, 0.0
    %v768 = vpack.c.bf16 %v767, %v767
    %v769 = vld [vmem:[#allocation7] sm:$0xf]
    %v770 = vld [vmem:[#allocation7 + $0x4] sm:$0xf]
    %v771 = vld [vmem:[#allocation7 + $0x8] sm:$0xf]
    %v772 = vld [vmem:[#allocation7 + $0xc] sm:$0xf]
    %v773 = vld [vmem:[#allocation7 + $0x10] sm:$0xf]
    %v774 = vld [vmem:[#allocation7 + $0x14] sm:$0xf]
    %v775 = vld [vmem:[#allocation7 + $0x18] sm:$0xf]
    %v776 = vld [vmem:[#allocation7 + $0x1c] sm:$0xf]
    %v777 = vld [vmem:[#allocation7 + $0x20] sm:$0xf]
    %v778 = vld [vmem:[#allocation7 + $0x24] sm:$0xf]
    %v779 = vld [vmem:[#allocation7 + $0x28] sm:$0xf]
    %v780 = vld [vmem:[#allocation7 + $0x2c] sm:$0xf]
    %v781 = vld [vmem:[#allocation7 + $0x30] sm:$0xf]
    %v782 = vld [vmem:[#allocation7 + $0x34] sm:$0xf]
    %v783 = vld [vmem:[#allocation7 + $0x38] sm:$0xf]
    %v784 = vld [vmem:[#allocation7 + $0x3c] sm:$0xf]
    %v785 = vld [vmem:[%s4] sm:$0x1]
    %v787 = vlaneseq
    %v788 = vshrl.u32 %v787, 7
    %v789 = vsub.s32 0, %v788
    %v790 = vrot.slane %v785, %v789
    %v808 = vunpack.c.l.b16 %v769
    %v809 = vunpack.c.l.b16 %v770
    %v810 = vunpack.c.l.b16 %v771
    %v811 = vunpack.c.l.b16 %v772
    %v812 = vunpack.c.l.b16 %v773
    %v813 = vunpack.c.l.b16 %v774
    %v814 = vunpack.c.l.b16 %v775
    %v815 = vunpack.c.l.b16 %v776
    %v816 = vunpack.c.l.b16 %v777
    %v817 = vunpack.c.l.b16 %v778
    %v818 = vunpack.c.l.b16 %v779
    %v819 = vunpack.c.l.b16 %v780
    %v820 = vunpack.c.l.b16 %v781
    %v821 = vunpack.c.l.b16 %v782
    %v822 = vunpack.c.l.b16 %v783
    %v823 = vunpack.c.l.b16 %v784
    %v824 = vpack.c.b16 %v809, %v808
    %v825 = vpack.c.b16 %v811, %v810
    %v826 = vpack.c.b16 %v813, %v812
    %v827 = vpack.c.b16 %v815, %v814
    %v828 = vpack.c.b16 %v817, %v816
    %v829 = vpack.c.b16 %v819, %v818
    %v830 = vpack.c.b16 %v821, %v820
    %v831 = vpack.c.b16 %v823, %v822
    %840 = vmatprep.subr.bf16.mxu0 0
    %841 = vmatpush1.bf16.msra.mxu0 %v831
    %842 = vmatprep.subr.bf16.mxu0 0
    %843 = vmatpush1.bf16.msra.mxu0 %v830
    %844 = vmatprep.subr.bf16.mxu0 0
    %845 = vmatpush1.bf16.msra.mxu0 %v829
    %846 = vmatprep.subr.bf16.mxu0 0
    %847 = vmatpush1.bf16.msra.mxu0 %v828
    %848 = vmatprep.subr.bf16.mxu0 0
    %849 = vmatpush1.bf16.msra.mxu0 %v827
    %850 = vmatprep.subr.bf16.mxu0 0
    %851 = vmatpush1.bf16.msra.mxu0 %v826
    %852 = vmatprep.subr.bf16.mxu0 0
    %853 = vmatpush1.bf16.msra.mxu0 %v825
    %854 = vmatprep.subr.bf16.mxu0 0
    %855 = vmatpush1.bf16.msra.mxu0 %v824
    %856 = vmatprep.subr.bf16.mxu0 0
    %857 = vmatpush2.bf16.msra.mxu0 0
    %858 = vmatprep.subr.bf16.mxu0 0
    %859 = vmatpush2.bf16.msra.mxu0 0
    %860 = vmatprep.subr.bf16.mxu0 0
    %861 = vmatpush2.bf16.msra.mxu0 0
    %862 = vmatprep.subr.bf16.mxu0 0
    %863 = vmatpush2.bf16.msra.mxu0 0
    %864 = vmatprep.subr.bf16.mxu0 0
    %865 = vmatpush2.bf16.msra.mxu0 0
    %866 = vmatprep.subr.bf16.mxu0 0
    %867 = vmatpush2.bf16.msra.mxu0 0
    %868 = vmatprep.subr.bf16.mxu0 0
    %869 = vmatpush2.bf16.msra.mxu0 0
    %870 = vmatprep.subr.bf16.mxu0 0
    %871 = vmatpush2.bf16.msra.mxu0 0
    %872 = vmatprep.mubr.bf16.mxu0 0
    %873 = vmatmul.mubr.bf16.gmra.mxu0 %v768
    %v874 = vpop.f32.mrf.mxu0
    %v875 = vadd.f32 %v790, %v874
    %v876 = vpop.f32.mrf.mxu0
    %v877 = vpop.f32.mrf.mxu0
    %v878 = vpop.f32.mrf.mxu0
    %879 = vdwg.mxu0
    %v880 = vmax.f32 %v875, 0.0
    %v881 = vpack.c.bf16 %v880, %v880
    %v882 = vld [vmem:[#allocation8] sm:$0xf]
    %v883 = vld [vmem:[#allocation8 + $0x4] sm:$0xf]
    %v884 = vld [vmem:[#allocation8 + $0x8] sm:$0xf]
    %v885 = vld [vmem:[#allocation8 + $0xc] sm:$0xf]
    %v886 = vld [vmem:[#allocation8 + $0x10] sm:$0xf]
    %v887 = vld [vmem:[#allocation8 + $0x14] sm:$0xf]
    %v888 = vld [vmem:[#allocation8 + $0x18] sm:$0xf]
    %v889 = vld [vmem:[#allocation8 + $0x1c] sm:$0xf]
    %v890 = vld [vmem:[#allocation8 + $0x20] sm:$0xf]
    %v891 = vld [vmem:[#allocation8 + $0x24] sm:$0xf]
    %v892 = vld [vmem:[#allocation8 + $0x28] sm:$0xf]
    %v893 = vld [vmem:[#allocation8 + $0x2c] sm:$0xf]
    %v894 = vld [vmem:[#allocation8 + $0x30] sm:$0xf]
    %v895 = vld [vmem:[#allocation8 + $0x34] sm:$0xf]
    %v896 = vld [vmem:[#allocation8 + $0x38] sm:$0xf]
    %v897 = vld [vmem:[#allocation8 + $0x3c] sm:$0xf]
    %v898 = vld [vmem:[%s6] sm:$0x1]
    %v900 = vlaneseq
    %v901 = vshrl.u32 %v900, 7
    %v902 = vsub.s32 0, %v901
    %v903 = vrot.slane %v898, %v902
    %v921 = vunpack.c.l.b16 %v882
    %v922 = vunpack.c.l.b16 %v883
    %v923 = vunpack.c.l.b16 %v884
    %v924 = vunpack.c.l.b16 %v885
    %v925 = vunpack.c.l.b16 %v886
    %v926 = vunpack.c.l.b16 %v887
    %v927 = vunpack.c.l.b16 %v888
    %v928 = vunpack.c.l.b16 %v889
    %v929 = vunpack.c.l.b16 %v890
    %v930 = vunpack.c.l.b16 %v891
    %v931 = vunpack.c.l.b16 %v892
    %v932 = vunpack.c.l.b16 %v893
    %v933 = vunpack.c.l.b16 %v894
    %v934 = vunpack.c.l.b16 %v895
    %v935 = vunpack.c.l.b16 %v896
    %v936 = vunpack.c.l.b16 %v897
    %v937 = vpack.c.b16 %v922, %v921
    %v938 = vpack.c.b16 %v924, %v923
    %v939 = vpack.c.b16 %v926, %v925
    %v940 = vpack.c.b16 %v928, %v927
    %v941 = vpack.c.b16 %v930, %v929
    %v942 = vpack.c.b16 %v932, %v931
    %v943 = vpack.c.b16 %v934, %v933
    %v944 = vpack.c.b16 %v936, %v935
    %953 = vmatprep.subr.bf16.mxu0 0
    %954 = vmatpush1.bf16.msra.mxu0 %v944
    %955 = vmatprep.subr.bf16.mxu0 0
    %956 = vmatpush1.bf16.msra.mxu0 %v943
    %957 = vmatprep.subr.bf16.mxu0 0
    %958 = vmatpush1.bf16.msra.mxu0 %v942
    %959 = vmatprep.subr.bf16.mxu0 0
    %960 = vmatpush1.bf16.msra.mxu0 %v941
    %961 = vmatprep.subr.bf16.mxu0 0
    %962 = vmatpush1.bf16.msra.mxu0 %v940
    %963 = vmatprep.subr.bf16.mxu0 0
    %964 = vmatpush1.bf16.msra.mxu0 %v939
    %965 = vmatprep.subr.bf16.mxu0 0
    %966 = vmatpush1.bf16.msra.mxu0 %v938
    %967 = vmatprep.subr.bf16.mxu0 0
    %968 = vmatpush1.bf16.msra.mxu0 %v937
    %969 = vmatprep.subr.bf16.mxu0 0
    %970 = vmatpush2.bf16.msra.mxu0 0
    %971 = vmatprep.subr.bf16.mxu0 0
    %972 = vmatpush2.bf16.msra.mxu0 0
    %973 = vmatprep.subr.bf16.mxu0 0
    %974 = vmatpush2.bf16.msra.mxu0 0
    %975 = vmatprep.subr.bf16.mxu0 0
    %976 = vmatpush2.bf16.msra.mxu0 0
    %977 = vmatprep.subr.bf16.mxu0 0
    %978 = vmatpush2.bf16.msra.mxu0 0
    %979 = vmatprep.subr.bf16.mxu0 0
    %980 = vmatpush2.bf16.msra.mxu0 0
    %981 = vmatprep.subr.bf16.mxu0 0
    %982 = vmatpush2.bf16.msra.mxu0 0
    %983 = vmatprep.subr.bf16.mxu0 0
    %984 = vmatpush2.bf16.msra.mxu0 0
    %985 = vmatprep.mubr.bf16.mxu0 0
    %986 = vmatmul.mubr.bf16.gmra.mxu0 %v881
    %v987 = vpop.f32.mrf.mxu0
    %v988 = vadd.f32 %v903, %v987
    %v989 = vpop.f32.mrf.mxu0
    %v990 = vpop.f32.mrf.mxu0
    %v991 = vpop.f32.mrf.mxu0
    %992 = vdwg.mxu0
    %993 = vmax.xlane.f32.xlu0 %v988
    %v994 = vpop.xlane.xlu0 %993
    %v995 = vsub.f32 %v988, %v994
    %v996 = vmul.f32 %v995, 1.442695
    %v997 = vpow.pop %v996
    %998 = vadd.xlane.f32.xlu0 %v997
    %v999 = vpop.xlane.xlu0 %998
    %v1000 = vrcp.pop %v999
    %v1001 = vmul.f32 %v997, %v1000
    %1002 = vst [vmem:[#allocation10] sm:$0xff] %v1001
    // Predicated region
    $region46: #{tpu_custom_call.1} parent=1 // pred_check
      _
    $region47: #{tpu_custom_call.1} parent=1 // pred_check_branch
      %1004 = sbr.rel (0) target = $region49
    $region48: #{tpu_custom_call.1} parent=1 // pred_region
      %s1006 = ssub.s32 128, 128
      %1007 = vsyncadd [#allocation4], %s1006
      %s1009 = sshll.u32 [#allocation10], 4
      %s1010 = int_to_ptr.vmem [resolvable:$true] %s1009
      %1012 = dma.vmem_to_hbm [thread:$0]  %s1010, 128, %s7, [#allocation4]
    $region49: #{tpu_custom_call.1} parent=1 // pred_fallthru
      _
    // Predicated region
    $region50: #{tpu_custom_call.1} parent=1 // pred_check
      _
    $region51: #{tpu_custom_call.1} parent=1 // pred_check_branch
      %1014 = sbr.rel (0) target = $region53
    $region52: #{tpu_custom_call.1} parent=1 // pred_region
      %1015 = dma.done [#allocation4], 128
    $region53: #{tpu_custom_call.1} parent=1 // pred_fallthru
      _
    %1016 = vsyncpa [#allocation3], 1
    %1017 = vsyncpa [#allocation6], 1
    %1018 = vsyncpa [#allocation9], 1
    %1019 = vsyncpa [#allocation4], 1

</llo_original>
